<compile_context>
chip_gen: v6e
topology: v6e:2x2x1
jax: 0.10.0
libtpu: 0.0.40
codegen_flags: <defaults>
</compile_context>

<pallas_src>
import functools

import jax
import jax.numpy as jnp
from jax.experimental import pallas as pl
from jax.experimental.pallas import tpu as pltpu


def _channel_attention_kernel(hw_total, x_ref, w1t_ref, w2t_ref, o_ref,
                              sum_ref, max_ref):
    # x_ref:  (1, C, tile_hw)   native dtype, lane-dense over spatial
    # w1t_ref: (C, C_mid), w2t_ref: (C_mid, C)  (resident: constant block index)
    # o_ref:  (1, 1, C)
    # sum_ref/max_ref: (1, C) f32 scratch accumulators
    hw_idx = pl.program_id(1)

    @pl.when(hw_idx == 0)
    def _init():
        sum_ref[...] = jnp.zeros_like(sum_ref)
        max_ref[...] = jnp.full_like(max_ref, -jnp.inf)

    x = x_ref[...]  # (1, C, tile_hw), keep native dtype on the hot path
    # Partial pooling over the lane (spatial) axis; accumulate in f32 scratch.
    sum_ref[...] += jnp.sum(x, axis=-1, dtype=jnp.float32)                 # (1, C)
    max_ref[...] = jnp.maximum(max_ref[...],
                               jnp.max(x, axis=-1).astype(jnp.float32))    # (1, C)

    # Epilogue: tiny fused MLP + sigmoid, only on the final reduction step.
    @pl.when(hw_idx == pl.num_programs(1) - 1)
    def _finalize():
        avg = sum_ref[...] * (1.0 / float(hw_total))     # (1, C)
        mx = max_ref[...]                                # (1, C)
        pooled = jnp.concatenate([avg, mx], axis=0)      # (2, C): fuse both paths

        w1t = w1t_ref[...].astype(jnp.float32)           # (C, C_mid)
        w2t = w2t_ref[...].astype(jnp.float32)           # (C_mid, C)

        h = jnp.maximum(
            jnp.dot(pooled, w1t, preferred_element_type=jnp.float32), 0.0)
        y = jnp.dot(h, w2t, preferred_element_type=jnp.float32)   # (2, C)

        out = y[0:1, :] + y[1:2, :]                      # avg path + max path
        o_ref[...] = jax.nn.sigmoid(out)[None, ...].astype(o_ref.dtype)


def _pick_tile_hw(hw, c, itemsize, target_bytes=4 * 1024 * 1024, max_tile=8192):
    """Largest multiple of 128 that divides HW, <= per-buffer byte budget."""
    if hw % 128 != 0:
        return hw  # fall back to a single (full-extent) spatial block
    budget = max(128, (target_bytes // max(1, c * itemsize)) // 128 * 128)
    cap = min(hw, max_tile, budget)
    best = None
    t = 128
    while t <= cap:
        if hw % t == 0:
            best = t
        t += 128
    return best if best is not None else hw


def channel_attention(x_nchw, w1, w2):
    """x_nchw: (B, C, H, W); w1: (C_mid, C) = fc1.weight[:, :, 0, 0];
    w2: (C, C_mid) = fc2.weight[:, :, 0, 0].  Returns (B, C, 1, 1)."""
    B, C, H, W = x_nchw.shape
    C_mid = w1.shape[0]
    HW = H * W

    x = x_nchw.reshape(B, C, HW)   # free, contiguous reshape (no HBM transpose)
    w1t = jnp.transpose(w1)        # (C, C_mid)  -- tiny
    w2t = jnp.transpose(w2)        # (C_mid, C)  -- tiny

    itemsize = x.dtype.itemsize
    tile_hw = _pick_tile_hw(HW, C, itemsize)
    n_hw = HW // tile_hw

    kernel = functools.partial(_channel_attention_kernel, HW)

    # Bandwidth-bound cost hint: one pass over x dominates.
    bytes_accessed = (x.size * itemsize
                      + w1.size * w1.dtype.itemsize
                      + w2.size * w2.dtype.itemsize
                      + B * C * itemsize)
    flops = 2 * B * C * HW + 2 * (2 * B) * C * C_mid * 2
    cost = pl.CostEstimate(flops=flops, transcendentals=B * C,
                           bytes_accessed=bytes_accessed)

    # Double-buffered x tile + resident weights/output/scratch, with headroom.
    vmem_need = (2 * C * tile_hw * itemsize
                 + (C * C_mid + C_mid * C + 4 * C) * 4)
    vmem_limit = int(min(100 * 2**20, max(16 * 2**20, 4 * vmem_need)))

    out = pl.pallas_call(
        kernel,
        out_shape=jax.ShapeDtypeStruct((B, 1, C), x_nchw.dtype),
        grid_spec=pltpu.PrefetchScalarGridSpec(
            num_scalar_prefetch=0,
            grid=(B, n_hw),  # reduction (HW) axis last
            in_specs=[
                pl.BlockSpec((1, C, tile_hw), lambda b, h: (b, 0, h)),
                pl.BlockSpec((C, C_mid), lambda b, h: (0, 0)),
                pl.BlockSpec((C_mid, C), lambda b, h: (0, 0)),
            ],
            out_specs=pl.BlockSpec((1, 1, C), lambda b, h: (b, 0, 0)),
            scratch_shapes=[pltpu.VMEM((1, C), jnp.float32),   # partial sum
                            pltpu.VMEM((1, C), jnp.float32)],  # running max
        ),
        compiler_params=pltpu.CompilerParams(
            dimension_semantics=("parallel", "arbitrary"),
            vmem_limit_bytes=vmem_limit),
        cost_estimate=cost,
    )(x, w1t, w2t)

    return out.reshape(B, C, 1, 1)


def channel_attention_ref(x_nchw, w1, w2):
    """Pure-JAX reference mirroring the PyTorch forward."""
    B, C, H, W = x_nchw.shape
    avg = jnp.mean(x_nchw, axis=(2, 3))          # (B, C)
    mx = jnp.max(x_nchw, axis=(2, 3))            # (B, C)

    def mlp(v):
        h = jnp.maximum(v @ w1.T, 0.0)           # fc1 + relu
        return h @ w2.T                          # fc2

    out = jax.nn.sigmoid(mlp(avg) + mlp(mx))
    return out.reshape(B, C, 1, 1)


if __name__ == "__main__":
    B, C, H, W = 2, 4, 16, 16
    ratio = 1
    C_mid = C // ratio

    key = jax.random.PRNGKey(0)
    kx, k1, k2 = jax.random.split(key, 3)

    x = jax.random.normal(kx, (B, C, H, W), dtype=jnp.float32)
    # Deterministic synthetic weights (Conv2d(C, C_mid, 1, bias=False) etc.)
    w1 = jax.random.normal(k1, (C_mid, C), dtype=jnp.float32) * 0.1
    w2 = jax.random.normal(k2, (C, C_mid), dtype=jnp.float32) * 0.1

    out = channel_attention(x, w1, w2)
    out = jax.block_until_ready(out)

    ref = channel_attention_ref(x, w1, w2)
    assert out.shape == (B, C, 1, 1)
    assert jnp.allclose(out, ref, atol=1e-5, rtol=1e-5), (
        f"mismatch: max abs err {jnp.max(jnp.abs(out - ref))}")

    print("KERNEL_OK")
</pallas_src>

<mosaic_0001>
module attributes {stable_mosaic.version = 11 : i64} {
  func.func @_channel_attention_kernel(%arg0: i32, %arg1: i32, %arg2: memref<1x4x256xf32, #tpu.memory_space<vmem>>, %arg3: memref<4x4xf32, #tpu.memory_space<vmem>>, %arg4: memref<4x4xf32, #tpu.memory_space<vmem>>, %arg5: memref<1x1x4xf32, #tpu.memory_space<vmem>>, %arg6: memref<1x4xf32, #tpu.memory_space<vmem>>, %arg7: memref<1x4xf32, #tpu.memory_space<vmem>>) attributes {dimension_semantics = [#tpu.dimension_semantics<parallel>, #tpu.dimension_semantics<arbitrary>], iteration_bounds = array<i64: 2, 1>, scalar_prefetch = 0 : i64, scratch_operands = 2 : i64, tpu.core_type = #tpu.core_type<tc>, window_params = [{transform_indices = @transform_0, window_bounds = array<i64: 1, 4, 256>}, {pipeline_mode = #tpu.pipeline_mode<synchronous>, transform_indices = @transform_1, window_bounds = array<i64: 4, 4>}, {pipeline_mode = #tpu.pipeline_mode<synchronous>, transform_indices = @transform_2, window_bounds = array<i64: 4, 4>}, {transform_indices = @transform_3, window_bounds = array<i64: 1, 1, 4>}]} {
    %c0_i32 = arith.constant 0 : i32
    %0 = arith.cmpi eq, %arg1, %c0_i32 : i32
    %1 = arith.extui %0 : i1 to i32
    %c0_i32_0 = arith.constant 0 : i32
    %2 = arith.cmpi ne, %1, %c0_i32_0 : i32
    scf.if %2 {
      %cst_14 = arith.constant 0.000000e+00 : f32
      %15 = vector.broadcast %cst_14 : f32 to vector<1x4xf32>
      %c0_15 = arith.constant 0 : index
      %c0_16 = arith.constant 0 : index
      %16 = vector.load %arg6[%c0_15, %c0_16] : memref<1x4xf32, #tpu.memory_space<vmem>>, vector<1x4xf32>
      tpu.vector_store %arg6[%c0_15, %c0_16], %15 {strides = array<i32>} : memref<1x4xf32, #tpu.memory_space<vmem>>, vector<1x4xf32>,
      %cst_17 = arith.constant 0xFF800000 : f32
      %17 = vector.broadcast %cst_17 : f32 to vector<1x4xf32>
      %c0_18 = arith.constant 0 : index
      %c0_19 = arith.constant 0 : index
      %18 = vector.load %arg7[%c0_18, %c0_19] : memref<1x4xf32, #tpu.memory_space<vmem>>, vector<1x4xf32>
      tpu.vector_store %arg7[%c0_18, %c0_19], %17 {strides = array<i32>} : memref<1x4xf32, #tpu.memory_space<vmem>>, vector<1x4xf32>,
    } else {
    }
    %c0 = arith.constant 0 : index
    %c0_1 = arith.constant 0 : index
    %c0_2 = arith.constant 0 : index
    %3 = vector.load %arg2[%c0, %c0_1, %c0_2] : memref<1x4x256xf32, #tpu.memory_space<vmem>>, vector<1x4x256xf32>
    %c0_3 = arith.constant 0 : index
    %c0_4 = arith.constant 0 : index
    %4 = vector.load %arg6[%c0_3, %c0_4] : memref<1x4xf32, #tpu.memory_space<vmem>>, vector<1x4xf32>
    %cst = arith.constant dense<0.000000e+00> : vector<1x4xf32>
    %5 = vector.multi_reduction <add>, %3, %cst [2] : vector<1x4x256xf32> to vector<1x4xf32>
    %6 = arith.addf %4, %5 : vector<1x4xf32>
    %c0_5 = arith.constant 0 : index
    %c0_6 = arith.constant 0 : index
    %7 = vector.load %arg6[%c0_5, %c0_6] : memref<1x4xf32, #tpu.memory_space<vmem>>, vector<1x4xf32>
    tpu.vector_store %arg6[%c0_5, %c0_6], %6 {strides = array<i32>} : memref<1x4xf32, #tpu.memory_space<vmem>>, vector<1x4xf32>,
    %c0_7 = arith.constant 0 : index
    %c0_8 = arith.constant 0 : index
    %8 = vector.load %arg7[%c0_7, %c0_8] : memref<1x4xf32, #tpu.memory_space<vmem>>, vector<1x4xf32>
    %cst_9 = arith.constant dense<0xFF800000> : vector<1x4xf32>
    %9 = vector.multi_reduction <maximumf>, %3, %cst_9 [2] : vector<1x4x256xf32> to vector<1x4xf32>
    %10 = arith.maximumf %8, %9 : vector<1x4xf32>
    %c0_10 = arith.constant 0 : index
    %c0_11 = arith.constant 0 : index
    %11 = vector.load %arg7[%c0_10, %c0_11] : memref<1x4xf32, #tpu.memory_space<vmem>>, vector<1x4xf32>
    tpu.vector_store %arg7[%c0_10, %c0_11], %10 {strides = array<i32>} : memref<1x4xf32, #tpu.memory_space<vmem>>, vector<1x4xf32>,
    %c0_i32_12 = arith.constant 0 : i32
    %12 = arith.cmpi eq, %arg1, %c0_i32_12 : i32
    %13 = arith.extui %12 : i1 to i32
    %c0_i32_13 = arith.constant 0 : i32
    %14 = arith.cmpi ne, %13, %c0_i32_13 : i32
    scf.if %14 {
      %c0_14 = arith.constant 0 : index
      %c0_15 = arith.constant 0 : index
      %15 = vector.load %arg6[%c0_14, %c0_15] : memref<1x4xf32, #tpu.memory_space<vmem>>, vector<1x4xf32>
      %cst_16 = arith.constant 3.906250e-03 : f32
      %16 = vector.broadcast %cst_16 : f32 to vector<1x4xf32>
      %17 = arith.mulf %15, %16 : vector<1x4xf32>
      %c0_17 = arith.constant 0 : index
      %c0_18 = arith.constant 0 : index
      %18 = vector.load %arg7[%c0_17, %c0_18] : memref<1x4xf32, #tpu.memory_space<vmem>>, vector<1x4xf32>
      %19 = tpu.concatenate %17, %18 in 0 : vector<1x4xf32>, vector<1x4xf32> -> vector<2x4xf32>
      %c0_19 = arith.constant 0 : index
      %c0_20 = arith.constant 0 : index
      %20 = vector.load %arg3[%c0_19, %c0_20] : memref<4x4xf32, #tpu.memory_space<vmem>>, vector<4x4xf32>
      %c0_21 = arith.constant 0 : index
      %c0_22 = arith.constant 0 : index
      %21 = vector.load %arg4[%c0_21, %c0_22] : memref<4x4xf32, #tpu.memory_space<vmem>>, vector<4x4xf32>
      %cst_23 = arith.constant dense<0.000000e+00> : vector<2x4xf32>
      %22 = tpu.matmul %19, %20, %cst_23 {dimension_numbers = #tpu.dot_dimension_numbers<[1], [0], [0], [1], [0, 0, 1, 1], [], []>} : vector<2x4xf32>, vector<4x4xf32>, vector<2x4xf32> -> vector<2x4xf32>
      %cst_24 = arith.constant 0.000000e+00 : f32
      %23 = vector.broadcast %cst_24 : f32 to vector<2x4xf32>
      %24 = arith.maximumf %22, %23 : vector<2x4xf32>
      %cst_25 = arith.constant dense<0.000000e+00> : vector<2x4xf32>
      %25 = tpu.matmul %24, %21, %cst_25 {dimension_numbers = #tpu.dot_dimension_numbers<[1], [0], [0], [1], [0, 0, 1, 1], [], []>} : vector<2x4xf32>, vector<4x4xf32>, vector<2x4xf32> -> vector<2x4xf32>
      %26 = vector.extract_strided_slice %25 {offsets = [0, 0], sizes = [1, 4], strides = [1, 1]} : vector<2x4xf32> to vector<1x4xf32>
      %27 = vector.extract_strided_slice %25 {offsets = [1, 0], sizes = [1, 4], strides = [1, 1]} : vector<2x4xf32> to vector<1x4xf32>
      %28 = arith.addf %26, %27 : vector<1x4xf32>
      %29 = arith.negf %28 : vector<1x4xf32>
      %30 = math.exp %29 : vector<1x4xf32>
      %cst_26 = arith.constant 1.000000e+00 : f32
      %31 = vector.broadcast %cst_26 : f32 to vector<1x4xf32>
      %32 = arith.addf %31, %30 : vector<1x4xf32>
      %33 = arith.divf %31, %32 : vector<1x4xf32>
      %34 = vector.shape_cast %33 : vector<1x4xf32> to vector<1x1x4xf32>
      %c0_27 = arith.constant 0 : index
      %c0_28 = arith.constant 0 : index
      %c0_29 = arith.constant 0 : index
      %35 = vector.load %arg5[%c0_27, %c0_28, %c0_29] : memref<1x1x4xf32, #tpu.memory_space<vmem>>, vector<1x1x4xf32>
      tpu.vector_store %arg5[%c0_27, %c0_28, %c0_29], %34 {strides = array<i32>} : memref<1x1x4xf32, #tpu.memory_space<vmem>>, vector<1x1x4xf32>,
    } else {
    }
    return
  }
  func.func @transform_0(%arg0: i32, %arg1: i32) -> (i32, i32, i32) {
    %c0_i32 = arith.constant 0 : i32
    %c0_i32_0 = arith.constant 0 : i32
    return %arg0, %c0_i32, %arg1 : i32, i32, i32
  }
  func.func @transform_1(%arg0: i32, %arg1: i32) -> (i32, i32) {
    %c0_i32 = arith.constant 0 : i32
    %c0_i32_0 = arith.constant 0 : i32
    %c0_i32_1 = arith.constant 0 : i32
    return %c0_i32, %c0_i32_0 : i32, i32
  }
  func.func @transform_2(%arg0: i32, %arg1: i32) -> (i32, i32) {
    %c0_i32 = arith.constant 0 : i32
    %c0_i32_0 = arith.constant 0 : i32
    %c0_i32_1 = arith.constant 0 : i32
    return %c0_i32, %c0_i32_0 : i32, i32
  }
  func.func @transform_3(%arg0: i32, %arg1: i32) -> (i32, i32, i32) {
    %c0_i32 = arith.constant 0 : i32
    %c0_i32_0 = arith.constant 0 : i32
    %c0_i32_1 = arith.constant 0 : i32
    return %arg0, %c0_i32, %c0_i32_0 : i32, i32, i32
  }
}

</mosaic_0001>

<llo_original>
// kernel: tpu_custom_call.1
$region0: #{tpu_custom_call.1}
  #allocation0 [shape = 'u32[]', space=smem, size = 0x4, offset = 0x4, fixed_abs, tag = 'smem constant byte address 0x4 - core index']
  #allocation1 [shape = 'u32[144,128]{1,0:T(1,128)}', space=vmem, size = 0x12000, scoped, tag = 'internal scratch']
  #allocation2 [shape = 'f32[1,4]{1,0:T(1,128)}', space=vmem, size = 0x200, scoped, tag = 'scratch operand']
  #allocation3 [shape = 'f32[1,4]{1,0:T(1,128)}', space=vmem, size = 0x200, scoped, tag = 'scratch operand']
  %s0 = inlined_call_operand.hbm [shape: f32[2,4,256], index: 0, kind: input, shape index: {}]
  %s1 = inlined_call_operand.hbm [shape: f32[4,4], index: 1, kind: input, shape index: {}]
  %s2 = inlined_call_operand.hbm [shape: f32[4,4], index: 2, kind: input, shape index: {}]
  %s3 = inlined_call_operand.hbm [shape: f32[2,1,4], index: 3, kind: output, shape index: {}]
  %s4 = sld [smem:[#allocation0]]
  $region65: #{tpu_custom_call.1} parent=0
    _
  %s6 = ssub.s32 1, %s4
  %s7 = scalar_select 0, %s6, %s4
  $region1: #{tpu_custom_call.1} parent=0
    #allocation4 [shape = 'u8[8192]{0}', space=vmem, size = 0x2000, scoped, tag = 'input window, operand 0']
    #allocation5 [shape = 's32[2]{0}', space=sflag, size = 0x8, scoped, tag = 'scoped memory for tpu_custom_call.1']
    #allocation6 [shape = 's32[2]{0}', space=sflag, size = 0x8, scoped, tag = 'scoped memory for tpu_custom_call.1']
    #allocation7 [shape = 'u8[2048]{0}', space=vmem, size = 0x800, scoped, tag = 'input window, operand 1, single buffered']
    #allocation8 [shape = 's32[1]{0}', space=sflag, size = 0x4, scoped, tag = 'scoped memory for tpu_custom_call.1']
    #allocation9 [shape = 'u8[2048]{0}', space=vmem, size = 0x800, scoped, tag = 'input window, operand 2, single buffered']
    #allocation10 [shape = 'u8[1024]{0}', space=vmem, size = 0x400, scoped, tag = 'output window, operand 0']
    %8 = vsyncpa [#allocation5], 0
    %s9 = scalar_lea.sflag [#allocation5], 1
    %10 = vsyncpa %s9, 0
    %11 = vsyncpa [#allocation8], 0
    %12 = vsyncpa [#allocation6], 0
    %s13 = scalar_lea.sflag [#allocation6], 1
    %14 = vsyncpa %s13, 0
    loop: start=0, step=1, limit=4
    $region2: #{tpu_custom_call.1} parent=1 // loop_pre_header
      _
    $region3: #{tpu_custom_call.1} parent=1 // loop_header
      %s16 = sphi 0, %s20
      %p17 = scmp.ge.s32.totalorder %s16, 4
      %s23 = sphi 0, %s35
      %s24 = sphi 0, %s31
      %s25 = sphi 0, %s23
      %s26 = sphi 0, %s24
      %s27 = sphi 0, %s25
      %s28 = sphi 0, %s26
      %s40 = sphi 0, %s42
      %s43 = sphi 0, %s40
      %s44 = sphi 0, %s43
      %s60 = sphi 0, %s44
      %s64 = sphi 0, %s64
      %s66 = sphi 0, %s64
      %s67 = sphi 0, %s66
      %s81 = sphi 0, %s67
      %s85 = sphi 0, %s85
      %s87 = sphi 0, %s85
      %s88 = sphi 0, %s87
      %s102 = sphi 0, %s88
      %s108 = sphi 0, %s110
      %s111 = sphi 0, %s108
      %s112 = sphi 0, %s111
      %s128 = sphi 0, %s112
    $region4: #{tpu_custom_call.1} parent=1 // loop_header_branch
      %19 = sbr.rel (%p17) target = $region8
    $region5: #{tpu_custom_call.1} parent=1 // loop_body
      %s21 = ssub.s32 %s16, 1
      %s22 = ssub.s32 %s16, 2
      %s29 = sadd.s32 1, %s24
      %p30 = scmp.ge.s32.totalorder %s29, 1
      %s31 = scalar_select %p30, 0, %s29
      %s32 = sadd.s32 1, %s23
      %s33 = scalar_select %p30, %s32, %s23
      %p34 = scmp.ge.s32.totalorder %s33, 2
      %s35 = scalar_select %p34, 0, %s33
      %s36 = ssub.s32 %s23, %s35
      %s37 = ssub.s32 %s24, %s31
      %s38 = sor.u32 %s36, %s37
      %p39 = scmp.eq.s32.totalorder %s38, 0
      %s41 = sadd.s32 %s40, 1
      %s42 = scalar_select %p39, %s40, %s41
      %p45 = pneg %p39
      %p46 = scmp.eq.s32.totalorder %s16, 1
      %p47 = por %p45, %p46
      %p48 = scmp.ne.s32.totalorder %s40, %s43
      %p49 = scmp.eq.s32.totalorder %s16, 0
      %p50 = por %p48, %p49
      %p51 = scmp.ne.s32.totalorder %s40, %s43
      %p52 = scmp.eq.s32.totalorder %s21, 1
      %p53 = por %p51, %p52
      %p54 = scmp.ne.s32.totalorder %s43, %s44
      %p55 = scmp.eq.s32.totalorder %s21, 0
      %p56 = por %p54, %p55
      %p57 = scmp.ne.s32.totalorder %s43, %s44
      %p58 = scmp.eq.s32.totalorder %s22, 1
      %p59 = por %p57, %p58
      %p61 = scmp.ne.s32.totalorder %s44, %s60
      %p62 = scmp.eq.s32.totalorder %s22, 0
      %p63 = por %p61, %p62
      %s65 = sadd.s32 %s64, 1
      %p68 = scmp.eq.s32.totalorder %s16, 1
      %p69 = scmp.ne.s32.totalorder %s64, %s66
      %p70 = scmp.eq.s32.totalorder %s16, 0
      %p71 = por %p69, %p70
      %p72 = scmp.ne.s32.totalorder %s64, %s66
      %p73 = scmp.eq.s32.totalorder %s21, 1
      %p74 = por %p72, %p73
      %p75 = scmp.ne.s32.totalorder %s66, %s67
      %p76 = scmp.eq.s32.totalorder %s21, 0
      %p77 = por %p75, %p76
      %p78 = scmp.ne.s32.totalorder %s66, %s67
      %p79 = scmp.eq.s32.totalorder %s22, 1
      %p80 = por %p78, %p79
      %p82 = scmp.ne.s32.totalorder %s67, %s81
      %p83 = scmp.eq.s32.totalorder %s22, 0
      %p84 = por %p82, %p83
      %s86 = sadd.s32 %s85, 1
      %p89 = scmp.eq.s32.totalorder %s16, 1
      %p90 = scmp.ne.s32.totalorder %s85, %s87
      %p91 = scmp.eq.s32.totalorder %s16, 0
      %p92 = por %p90, %p91
      %p93 = scmp.ne.s32.totalorder %s85, %s87
      %p94 = scmp.eq.s32.totalorder %s21, 1
      %p95 = por %p93, %p94
      %p96 = scmp.ne.s32.totalorder %s87, %s88
      %p97 = scmp.eq.s32.totalorder %s21, 0
      %p98 = por %p96, %p97
      %p99 = scmp.ne.s32.totalorder %s87, %s88
      %p100 = scmp.eq.s32.totalorder %s22, 1
      %p101 = por %p99, %p100
      %p103 = scmp.ne.s32.totalorder %s88, %s102
      %p104 = scmp.eq.s32.totalorder %s22, 0
      %p105 = por %p103, %p104
      %s106 = ssub.s32 %s23, %s35
      %p107 = scmp.eq.s32.totalorder %s106, 0
      %s109 = sadd.s32 %s108, 1
      %s110 = scalar_select %p107, %s108, %s109
      %p113 = pneg %p107
      %p114 = scmp.eq.s32.totalorder %s16, 1
      %p115 = por %p113, %p114
      %p116 = scmp.ne.s32.totalorder %s108, %s111
      %p117 = scmp.eq.s32.totalorder %s16, 0
      %p118 = por %p116, %p117
      %p119 = scmp.ne.s32.totalorder %s108, %s111
      %p120 = scmp.eq.s32.totalorder %s21, 1
      %p121 = por %p119, %p120
      %p122 = scmp.ne.s32.totalorder %s111, %s112
      %p123 = scmp.eq.s32.totalorder %s21, 0
      %p124 = por %p122, %p123
      %p125 = scmp.ne.s32.totalorder %s111, %s112
      %p126 = scmp.eq.s32.totalorder %s22, 1
      %p127 = por %p125, %p126
      %p129 = scmp.ne.s32.totalorder %s112, %s128
      %p130 = scmp.eq.s32.totalorder %s22, 0
      %p131 = por %p129, %p130
      %p132 = scmp.le.s32.totalorder 1, %s16
      %p133 = scmp.lt.s32.totalorder %s16, 3
      %p134 = pnand %p132, %p133
      %p135 = pneg %p134
      // Predicated region
      $region9: #{tpu_custom_call.1} parent=5 // pred_check
        _
      $region10: #{tpu_custom_call.1} parent=5 // pred_check_branch
        %137 = sbr.rel (%p134) target = $region12
      $region11: #{tpu_custom_call.1} parent=5 // pred_region
        %s138 = ssub.s32 %s16, 1
        // Predicated region
        $region13: #{tpu_custom_call.1} parent=11 // pred_check
          %p139 = pneg %p77
        $region14: #{tpu_custom_call.1} parent=11 // pred_check_branch
          %141 = sbr.rel (%p139) target = $region16
        $region15: #{tpu_custom_call.1} parent=11 // pred_region
          %s143 = ssub.s32 64, 64
          %144 = vsyncadd [#allocation8], %s143
          %s146 = sshll.u32 [#allocation7], 4
          %s147 = int_to_ptr.vmem [resolvable:$true] %s146
          %149 = dma.hbm_to_vmem [thread:$0]  %s1, 64, %s147, [#allocation8]
        $region16: #{tpu_custom_call.1} parent=11 // pred_fallthru
          _
        // Predicated region
        $region17: #{tpu_custom_call.1} parent=11 // pred_check
          %p150 = pneg %p98
        $region18: #{tpu_custom_call.1} parent=11 // pred_check_branch
          %152 = sbr.rel (%p150) target = $region20
        $region19: #{tpu_custom_call.1} parent=11 // pred_region
          %s154 = ssub.s32 64, 64
          %155 = vsyncadd [#allocation8], %s154
          %s157 = sshll.u32 [#allocation9], 4
          %s158 = int_to_ptr.vmem [resolvable:$true] %s157
          %160 = dma.hbm_to_vmem [thread:$0]  %s2, 64, %s158, [#allocation8]
        $region20: #{tpu_custom_call.1} parent=11 // pred_fallthru
          _
      $region12: #{tpu_custom_call.1} parent=5 // pred_fallthru
        _
      %p161 = scmp.lt.s32.totalorder %s16, 2
      // Predicated region
      $region21: #{tpu_custom_call.1} parent=5 // pred_check
        %p162 = pneg %p161
      $region22: #{tpu_custom_call.1} parent=5 // pred_check_branch
        %164 = sbr.rel (%p162) target = $region24
      $region23: #{tpu_custom_call.1} parent=5 // pred_region
        // Predicated region
        $region25: #{tpu_custom_call.1} parent=23 // pred_check
          %p165 = pneg %p50
        $region26: #{tpu_custom_call.1} parent=23 // pred_check_branch
          %167 = sbr.rel (%p165) target = $region28
        $region27: #{tpu_custom_call.1} parent=23 // pred_region
          %s168 = sand.u32 %s40, 1
          %s169 = scalar_lea.sflag [#allocation5], %s168
          %s170 = sand.u32 %s40, 1
          %s171 = smul.addr %s170, 8
          %s172 = scalar_lea.vmem [#allocation4], %s171
          %s173 = smul.u32 2, %s24
          %s175 = ssub.s32 128, 128
          %176 = vsyncadd %s169, %s175
          %s177 = smul.addr %s23, 2
          %s178 = sadd.s32 %s173, %s177
          %s179 = smul.addr %s178, 64
          %s180 = scalar_lea.hbm %s0, %s179
          %s182 = sshll.u32 %s172, 4
          %s183 = int_to_ptr.vmem [resolvable:$true] %s182
          %185 = dma.hbm_to_vmem [thread:$0]  %s180, 128, %s183, %s169
        $region28: #{tpu_custom_call.1} parent=23 // pred_fallthru
          _
      $region24: #{tpu_custom_call.1} parent=5 // pred_fallthru
        _
      %p186 = scmp.le.s32.totalorder 1, %s16
      %p187 = scmp.lt.s32.totalorder %s16, 3
      %p188 = pnand %p186, %p187
      %p189 = pneg %p188
      // Predicated region
      $region29: #{tpu_custom_call.1} parent=5 // pred_check
        _
      $region30: #{tpu_custom_call.1} parent=5 // pred_check_branch
        %191 = sbr.rel (%p188) target = $region32
      $region31: #{tpu_custom_call.1} parent=5 // pred_region
        %s192 = ssub.s32 %s16, 1
        %s193 = sand.u32 %s43, 1
        %s194 = scalar_lea.sflag [#allocation5], %s193
        %s195 = sand.u32 %s43, 1
        %s196 = smul.addr %s195, 8
        %s197 = scalar_lea.vmem [#allocation4], %s196
        // Predicated region
        $region33: #{tpu_custom_call.1} parent=31 // pred_check
          %p198 = pneg %p56
        $region34: #{tpu_custom_call.1} parent=31 // pred_check_branch
          %200 = sbr.rel (%p198) target = $region36
        $region35: #{tpu_custom_call.1} parent=31 // pred_region
          %201 = dma.done %s194, 128
        $region36: #{tpu_custom_call.1} parent=31 // pred_fallthru
          _
        // Predicated region
        $region37: #{tpu_custom_call.1} parent=31 // pred_check
          %p202 = pneg %p77
        $region38: #{tpu_custom_call.1} parent=31 // pred_check_branch
          %204 = sbr.rel (%p202) target = $region40
        $region39: #{tpu_custom_call.1} parent=31 // pred_region
          %205 = dma.done [#allocation8], 64
        $region40: #{tpu_custom_call.1} parent=31 // pred_fallthru
          _
        // Predicated region
        $region41: #{tpu_custom_call.1} parent=31 // pred_check
          %p206 = pneg %p98
        $region42: #{tpu_custom_call.1} parent=31 // pred_check_branch
          %208 = sbr.rel (%p206) target = $region44
        $region43: #{tpu_custom_call.1} parent=31 // pred_region
          %209 = dma.done [#allocation8], 64
        $region44: #{tpu_custom_call.1} parent=31 // pred_fallthru
          _
        %s210 = sand.u32 %s43, 1
        %s211 = scalar_lea.sflag [#allocation5], %s210
        %s212 = sand.u32 %s43, 1
        %s213 = smul.addr %s212, 8
        %s214 = scalar_lea.vmem [#allocation4], %s213
        %p215 = pneg %p56
        %p216 = pneg %p53
        %p217 = pneg %p77
        %p218 = pneg %p74
        %p219 = pneg %p98
        %p220 = pneg %p95
        %p221 = pneg %p124
        %p222 = pneg %p121
        %s223 = sand.u32 %s111, 1
        %s224 = scalar_lea.sflag [#allocation6], %s223
        %s225 = sand.u32 %s111, 1
        %s226 = scalar_lea.vmem [#allocation10], %s225
        %s227 = smul.u32 2, %s26
        %p228 = scmp.eq.s32.totalorder %s26, 0
        // Predicated region
        $region45: #{tpu_custom_call.1} parent=31 // pred_check
          %p229 = pneg %p228
        $region46: #{tpu_custom_call.1} parent=31 // pred_check_branch
          %231 = sbr.rel (%p229) target = $region48
        $region47: #{tpu_custom_call.1} parent=31 // pred_region
          %vm232 = vcmask 24576
          %233 = vst.msk [vmem:[#allocation2] sm:$0x1] %vm232, 0.0
          %234 = vst.msk [vmem:[#allocation3] sm:$0x1] %vm232, -inf
        $region48: #{tpu_custom_call.1} parent=31 // pred_fallthru
          _
        %v235 = vld [vmem:[%s197] sm:$0xff]
        %v236 = vld [vmem:[#allocation2] sm:$0x1]
        %v238 = vcombine.high %v235, %v235
        %vm240 = vcmask 1043456
        %v241 = vsel %vm240, %v235, 0.0
        %v242 = vsel %vm240, %v238, 0.0
        %v243 = vadd.f32 %v241, %v242
        %244 = vadd.xlane.f32.xlu0 %v243
        %v245 = vpop.xlane.xlu0 %244
        %v247 = vlaneseq
        %v248 = vshrl.u32 %v247, 7
        %v249 = vsub.s32 0, %v248
        %v250 = vrot.slane %v245, %v249
        %v251 = vlaneseq
        %v252 = vshrl.u32 %v251, 7
        %v253 = vsub.s32 1, %v252
        %v254 = vrot.slane %v245, %v253
        %v255 = vlaneseq
        %v256 = vshrl.u32 %v255, 7
        %v257 = vsub.s32 2, %v256
        %v258 = vrot.slane %v245, %v257
        %v259 = vlaneseq
        %v260 = vshrl.u32 %v259, 7
        %v261 = vsub.s32 3, %v260
        %v262 = vrot.slane %v245, %v261
        %v263 = vcombine.low %v250, %v254
        %v264 = vcombine.low %v258, %v262
        %v266 = vunpack.c.l.s4 1966171168
        %v267 = vunpack.c.0.s8 %v266
        %v268 = vlaneseq
        %v269 = vshrl.u32 %v268, 7
        %v270 = vsub.s32 %v267, %v269
        %v271 = vrot.slane %v263, %v270
        %v273 = vunpack.c.l.s4 1966171168
        %v274 = vunpack.c.0.s8 %v273
        %v275 = vlaneseq
        %v276 = vshrl.u32 %v275, 7
        %v277 = vsub.s32 %v274, %v276
        %v278 = vrot.slane %v264, %v277
        %v279 = vcombine.low %v271, %v278
        %v281 = vunpack.c.l.s4 1966171168
        %v282 = vunpack.c.0.s8 %v281
        %v283 = vlaneseq
        %v284 = vshrl.u32 %v283, 7
        %v285 = vsub.s32 %v282, %v284
        %v286 = vrot.slane %v279, %v285
        %287 = vset.pattern.permute.xlu0 0
        %288 = vperm.xlu0 %287, %v286
        %v289 = vpop.permute.xlu0 %288
        %v290 = vlaneseq
        %v291 = vand.u32 %v290, 127
        %v292 = vlaneseq
        %v293 = vshrl.u32 %v292, 7
        %v294 = vsub.s32 %v291, %v293
        %v295 = vrot.slane %v289, %v294
        %v297 = vunpack.c.l.s4 1966171168
        %v298 = vunpack.c.0.s8 %v297
        %v299 = vlaneseq
        %v300 = vshrl.u32 %v299, 7
        %v301 = vsub.s32 %v298, %v300
        %v302 = vrot.slane %v295, %v301
        %v304 = vunpack.c.l.s4 1966171168
        %v305 = vunpack.c.0.s8 %v304
        %v306 = vlaneseq
        %v307 = vshrl.u32 %v306, 7
        %v308 = vsub.s32 %v305, %v307
        %v309 = vrot.slane %v302, %v308
        %v311 = vadd.f32 %v236, %v309
        %vm312 = vcmask 24576
        %313 = vst.msk [vmem:[#allocation2] sm:$0x1] %vm312, %v311
        %v314 = vld [vmem:[#allocation3] sm:$0x1]
        %v315 = vsel %vm240, %v235, -inf
        %v316 = vsel %vm240, %v238, -inf
        %v317 = vmax.f32 %v315, %v316
        %318 = vmax.xlane.f32.xlu0 %v317
        %v319 = vpop.xlane.xlu0 %318
        %v321 = vlaneseq
        %v322 = vshrl.u32 %v321, 7
        %v323 = vsub.s32 0, %v322
        %v324 = vrot.slane %v319, %v323
        %v325 = vlaneseq
        %v326 = vshrl.u32 %v325, 7
        %v327 = vsub.s32 1, %v326
        %v328 = vrot.slane %v319, %v327
        %v329 = vlaneseq
        %v330 = vshrl.u32 %v329, 7
        %v331 = vsub.s32 2, %v330
        %v332 = vrot.slane %v319, %v331
        %v333 = vlaneseq
        %v334 = vshrl.u32 %v333, 7
        %v335 = vsub.s32 3, %v334
        %v336 = vrot.slane %v319, %v335
        %v337 = vcombine.low %v324, %v328
        %v338 = vcombine.low %v332, %v336
        %v340 = vunpack.c.l.s4 1966171168
        %v341 = vunpack.c.0.s8 %v340
        %v342 = vlaneseq
        %v343 = vshrl.u32 %v342, 7
        %v344 = vsub.s32 %v341, %v343
        %v345 = vrot.slane %v337, %v344
        %v347 = vunpack.c.l.s4 1966171168
        %v348 = vunpack.c.0.s8 %v347
        %v349 = vlaneseq
        %v350 = vshrl.u32 %v349, 7
        %v351 = vsub.s32 %v348, %v350
        %v352 = vrot.slane %v338, %v351
        %v353 = vcombine.low %v345, %v352
        %v355 = vunpack.c.l.s4 1966171168
        %v356 = vunpack.c.0.s8 %v355
        %v357 = vlaneseq
        %v358 = vshrl.u32 %v357, 7
        %v359 = vsub.s32 %v356, %v358
        %v360 = vrot.slane %v353, %v359
        %361 = vset.pattern.permute.xlu0 0
        %362 = vperm.xlu0 %361, %v360
        %v363 = vpop.permute.xlu0 %362
        %v364 = vlaneseq
        %v365 = vshrl.u32 %v364, 7
        %v366 = vsub.s32 %v291, %v365
        %v367 = vrot.slane %v363, %v366
        %v369 = vunpack.c.l.s4 1966171168
        %v370 = vunpack.c.0.s8 %v369
        %v371 = vlaneseq
        %v372 = vshrl.u32 %v371, 7
        %v373 = vsub.s32 %v370, %v372
        %v374 = vrot.slane %v367, %v373
        %v376 = vunpack.c.l.s4 1966171168
        %v377 = vunpack.c.0.s8 %v376
        %v378 = vlaneseq
        %v379 = vshrl.u32 %v378, 7
        %v380 = vsub.s32 %v377, %v379
        %v381 = vrot.slane %v374, %v380
        %v383 = vmax.f32 %v314, %v381
        %384 = vst.msk [vmem:[#allocation3] sm:$0x1] %vm312, %v383
        // Predicated region
        $region49: #{tpu_custom_call.1} parent=31 // pred_check
          %p385 = pneg %p228
        $region50: #{tpu_custom_call.1} parent=31 // pred_check_branch
          %387 = sbr.rel (%p385) target = $region52
        $region51: #{tpu_custom_call.1} parent=31 // pred_region
          %v388 = vld [vmem:[#allocation2] sm:$0x1]
          %v389 = vmul.f32 %v388, 0.00390625
          %v390 = vld [vmem:[#allocation3] sm:$0x1]
          %v392 = vlaneseq
          %v393 = vshrl.u32 %v392, 7
          %v394 = vsub.s32 0, %v393
          %v395 = vrot.slane %v390, %v394
          %vm397 = vcmask 1040384
          %v398 = vsel %vm397, %v389, %v395
          %v399 = vld [vmem:[#allocation7] sm:$0xf]
          %v400 = vld [vmem:[#allocation9] sm:$0xf]
          %vm401 = vcmask 31744
          %v403 = vsel %vm401, %v398, 0
          %v406 = vsel %vm240, %v399, 0
          %408 = vmatprep.subr.mxu0 0.0
          %409 = vmatpush1.msra.mxu0 0.0
          %410 = vmatprep.subr.mxu0 0.0
          %411 = vmatpush1.msra.mxu0 0.0
          %412 = vmatprep.subr.mxu0 0.0
          %413 = vmatpush1.msra.mxu0 0.0
          %414 = vmatprep.subr.mxu0 0.0
          %415 = vmatpush1.msra.mxu0 0.0
          %416 = vmatprep.subr.mxu0 0.0
          %417 = vmatpush1.msra.mxu0 0.0
          %418 = vmatprep.subr.mxu0 0.0
          %419 = vmatpush1.msra.mxu0 0.0
          %420 = vmatprep.subr.mxu0 0.0
          %421 = vmatpush1.msra.mxu0 0.0
          %422 = vmatprep.subr.mxu0 0.0
          %423 = vmatpush1.msra.mxu0 0.0
          %424 = vmatprep.subr.mxu0 0.0
          %425 = vmatpush1.msra.mxu0 0.0
          %426 = vmatprep.subr.mxu0 0.0
          %427 = vmatpush1.msra.mxu0 0.0
          %428 = vmatprep.subr.mxu0 0.0
          %429 = vmatpush1.msra.mxu0 0.0
          %430 = vmatprep.subr.mxu0 0.0
          %431 = vmatpush1.msra.mxu0 0.0
          %432 = vmatprep.subr.mxu0 0.0
          %433 = vmatpush1.msra.mxu0 0.0
          %434 = vmatprep.subr.mxu0 0.0
          %435 = vmatpush1.msra.mxu0 0.0
          %436 = vmatprep.subr.mxu0 0.0
          %437 = vmatpush1.msra.mxu0 0.0
          %438 = vmatprep.subr.mxu0 0.0
          %439 = vmatpush1.msra.mxu0 %v406
          %440 = vmatprep.subr.mxu0 0.0
          %441 = vmatpush2.msra.mxu0 0.0
          %442 = vmatprep.subr.mxu0 0.0
          %443 = vmatpush2.msra.mxu0 0.0
          %444 = vmatprep.subr.mxu0 0.0
          %445 = vmatpush2.msra.mxu0 0.0
          %446 = vmatprep.subr.mxu0 0.0
          %447 = vmatpush2.msra.mxu0 0.0
          %448 = vmatprep.subr.mxu0 0.0
          %449 = vmatpush2.msra.mxu0 0.0
          %450 = vmatprep.subr.mxu0 0.0
          %451 = vmatpush2.msra.mxu0 0.0
          %452 = vmatprep.subr.mxu0 0.0
          %453 = vmatpush2.msra.mxu0 0.0
          %454 = vmatprep.subr.mxu0 0.0
          %455 = vmatpush2.msra.mxu0 0.0
          %456 = vmatprep.subr.mxu0 0.0
          %457 = vmatpush2.msra.mxu0 0.0
          %458 = vmatprep.subr.mxu0 0.0
          %459 = vmatpush2.msra.mxu0 0.0
          %460 = vmatprep.subr.mxu0 0.0
          %461 = vmatpush2.msra.mxu0 0.0
          %462 = vmatprep.subr.mxu0 0.0
          %463 = vmatpush2.msra.mxu0 0.0
          %464 = vmatprep.subr.mxu0 0.0
          %465 = vmatpush2.msra.mxu0 0.0
          %466 = vmatprep.subr.mxu0 0.0
          %467 = vmatpush2.msra.mxu0 0.0
          %468 = vmatprep.subr.mxu0 0.0
          %469 = vmatpush2.msra.mxu0 0.0
          %470 = vmatprep.subr.mxu0 0.0
          %471 = vmatpush2.msra.mxu0 0.0
          %472 = vmatprep.mubr.f32.mxu0 0.0
          %473 = vmatmul.mubr.f32.gmra.mxu0 %v403
          %v474 = vpop.f32.mrf.mxu0
          %v475 = vadd.f32 0.0, %v474
          %v476 = vpop.f32.mrf.mxu0
          %477 = vdwg.mxu0
          %v478 = vmax.f32 %v475, 0.0
          %v480 = vsel %vm401, %v478, 0
          %v483 = vsel %vm240, %v400, 0
          %485 = vmatprep.subr.mxu0 0.0
          %486 = vmatpush1.msra.mxu0 0.0
          %487 = vmatprep.subr.mxu0 0.0
          %488 = vmatpush1.msra.mxu0 0.0
          %489 = vmatprep.subr.mxu0 0.0
          %490 = vmatpush1.msra.mxu0 0.0
          %491 = vmatprep.subr.mxu0 0.0
          %492 = vmatpush1.msra.mxu0 0.0
          %493 = vmatprep.subr.mxu0 0.0
          %494 = vmatpush1.msra.mxu0 0.0
          %495 = vmatprep.subr.mxu0 0.0
          %496 = vmatpush1.msra.mxu0 0.0
          %497 = vmatprep.subr.mxu0 0.0
          %498 = vmatpush1.msra.mxu0 0.0
          %499 = vmatprep.subr.mxu0 0.0
          %500 = vmatpush1.msra.mxu0 0.0
          %501 = vmatprep.subr.mxu0 0.0
          %502 = vmatpush1.msra.mxu0 0.0
          %503 = vmatprep.subr.mxu0 0.0
          %504 = vmatpush1.msra.mxu0 0.0
          %505 = vmatprep.subr.mxu0 0.0
          %506 = vmatpush1.msra.mxu0 0.0
          %507 = vmatprep.subr.mxu0 0.0
          %508 = vmatpush1.msra.mxu0 0.0
          %509 = vmatprep.subr.mxu0 0.0
          %510 = vmatpush1.msra.mxu0 0.0
          %511 = vmatprep.subr.mxu0 0.0
          %512 = vmatpush1.msra.mxu0 0.0
          %513 = vmatprep.subr.mxu0 0.0
          %514 = vmatpush1.msra.mxu0 0.0
          %515 = vmatprep.subr.mxu0 0.0
          %516 = vmatpush1.msra.mxu0 %v483
          %517 = vmatprep.subr.mxu0 0.0
          %518 = vmatpush2.msra.mxu0 0.0
          %519 = vmatprep.subr.mxu0 0.0
          %520 = vmatpush2.msra.mxu0 0.0
          %521 = vmatprep.subr.mxu0 0.0
          %522 = vmatpush2.msra.mxu0 0.0
          %523 = vmatprep.subr.mxu0 0.0
          %524 = vmatpush2.msra.mxu0 0.0
          %525 = vmatprep.subr.mxu0 0.0
          %526 = vmatpush2.msra.mxu0 0.0
          %527 = vmatprep.subr.mxu0 0.0
          %528 = vmatpush2.msra.mxu0 0.0
          %529 = vmatprep.subr.mxu0 0.0
          %530 = vmatpush2.msra.mxu0 0.0
          %531 = vmatprep.subr.mxu0 0.0
          %532 = vmatpush2.msra.mxu0 0.0
          %533 = vmatprep.subr.mxu0 0.0
          %534 = vmatpush2.msra.mxu0 0.0
          %535 = vmatprep.subr.mxu0 0.0
          %536 = vmatpush2.msra.mxu0 0.0
          %537 = vmatprep.subr.mxu0 0.0
          %538 = vmatpush2.msra.mxu0 0.0
          %539 = vmatprep.subr.mxu0 0.0
          %540 = vmatpush2.msra.mxu0 0.0
          %541 = vmatprep.subr.mxu0 0.0
          %542 = vmatpush2.msra.mxu0 0.0
          %543 = vmatprep.subr.mxu0 0.0
          %544 = vmatpush2.msra.mxu0 0.0
          %545 = vmatprep.subr.mxu0 0.0
          %546 = vmatpush2.msra.mxu0 0.0
          %547 = vmatprep.subr.mxu0 0.0
          %548 = vmatpush2.msra.mxu0 0.0
          %549 = vmatprep.mubr.f32.mxu0 0.0
          %550 = vmatmul.mubr.f32.gmra.mxu0 %v480
          %v551 = vpop.f32.mrf.mxu0
          %v552 = vadd.f32 0.0, %v551
          %v553 = vpop.f32.mrf.mxu0
          %554 = vdwg.mxu0
          %v556 = vrot.slane %v552, 1
          %v558 = vadd.f32 %v552, %v556
          %v559 = vxor.u32 %v558, 2147483648
          %v560 = vmul.f32 %v559, 1.442695
          %v561 = vpow.pop %v560
          %v562 = vadd.f32 %v561, 1.0
          %v563 = vrcp.pop %v562
          %v564 = vmul.f32 1.0, %v563
          %565 = vst.msk [vmem:[%s226] sm:$0x1] %vm312, %v564
        $region52: #{tpu_custom_call.1} parent=31 // pred_fallthru
          _
        %s566 = sand.u32 %s111, 1
        %s567 = scalar_lea.sflag [#allocation6], %s566
        %s568 = sand.u32 %s111, 1
        %s569 = scalar_lea.vmem [#allocation10], %s568
        // Predicated region
        $region53: #{tpu_custom_call.1} parent=31 // pred_check
          %p570 = pneg %p121
        $region54: #{tpu_custom_call.1} parent=31 // pred_check_branch
          %572 = sbr.rel (%p570) target = $region56
        $region55: #{tpu_custom_call.1} parent=31 // pred_region
          %s574 = ssub.s32 16, 16
          %575 = vsyncadd %s567, %s574
          %s576 = smul.addr %s25, 16
          %s577 = scalar_lea.hbm %s3, %s576
          %s579 = sshll.u32 %s569, 4
          %s580 = int_to_ptr.vmem [resolvable:$true] %s579
          %582 = dma.vmem_to_hbm [thread:$0]  %s580, 16, %s577, %s567
        $region56: #{tpu_custom_call.1} parent=31 // pred_fallthru
          _
      $region32: #{tpu_custom_call.1} parent=5 // pred_fallthru
        _
      %p583 = scmp.le.s32.totalorder 2, %s16
      // Predicated region
      $region57: #{tpu_custom_call.1} parent=5 // pred_check
        %p584 = pneg %p583
      $region58: #{tpu_custom_call.1} parent=5 // pred_check_branch
        %586 = sbr.rel (%p584) target = $region60
      $region59: #{tpu_custom_call.1} parent=5 // pred_region
        %s587 = ssub.s32 %s16, 2
        // Predicated region
        $region61: #{tpu_custom_call.1} parent=59 // pred_check
          %p588 = pneg %p127
        $region62: #{tpu_custom_call.1} parent=59 // pred_check_branch
          %590 = sbr.rel (%p588) target = $region64
        $region63: #{tpu_custom_call.1} parent=59 // pred_region
          %s591 = sand.u32 %s112, 1
          %s592 = scalar_lea.sflag [#allocation6], %s591
          %s593 = sand.u32 %s112, 1
          %s594 = scalar_lea.vmem [#allocation10], %s593
          %595 = dma.done %s592, 16
        $region64: #{tpu_custom_call.1} parent=59 // pred_fallthru
          _
      $region60: #{tpu_custom_call.1} parent=5 // pred_fallthru
        _
    $region6: #{tpu_custom_call.1} parent=1 // loop_footer
      %s20 = sadd.s32 1, %s16
    $region7: #{tpu_custom_call.1} parent=1 // loop_footer_branch
      %15 = sbr.rel target = $region3
    $region8: #{tpu_custom_call.1} parent=1 // loop_exit
      _
    %596 = vsyncpa [#allocation5], 1
    %s597 = scalar_lea.sflag [#allocation5], 1
    %598 = vsyncpa %s597, 1
    %599 = vsyncpa [#allocation8], 1
    %600 = vsyncpa [#allocation6], 1
    %s601 = scalar_lea.sflag [#allocation6], 1
    %602 = vsyncpa %s601, 1

</llo_original>
